<compile_context>
chip_gen: v5e
topology: v5e:2x2
jax: 0.10.0
libtpu: 0.0.40
codegen_flags: <defaults>
</compile_context>

<pallas_src>
import jax
import jax.numpy as jnp
from jax.experimental import pallas as pl
from jax.experimental.pallas import tpu as pltpu


def _ce_row_loss_kernel(a_ref, b_ref, t_ref, out_ref):
    """Per-row cross-entropy sums for one row tile -> (row_tile, 1) f32."""
    a = a_ref[...].astype(jnp.float32)
    b = b_ref[...].astype(jnp.float32)
    t = t_ref[...].astype(jnp.float32)
    # -(t*log(p) + (1-t)*log(1-p)) with p = a/(a+b)
    #   == log(a+b) - t*log(a) - (1-t)*log(b)
    ce = jnp.log(a + b) - t * jnp.log(a) - (1.0 - t) * jnp.log(b)
    out_ref[...] = jnp.sum(ce, axis=1, keepdims=True)


def _pick_row_tile(n_rows, n_classes, itemsize_logits, itemsize_targets,
                   min_sublane):
    """Largest row tile whose double-buffered tiles + f32 temps fit VMEM."""
    # Double-buffered input tiles (a, b, targets) ...
    per_row = 2 * (2 * n_classes * itemsize_logits + n_classes * itemsize_targets)
    # ... plus headroom for in-kernel f32 temporaries.
    per_row += 4 * n_classes * 4
    budget = 12 * 1024 * 1024          # well inside the 32 MiB scoped limit
    cap = max(budget // per_row, min_sublane)
    cap = min(cap, 1024)
    cap = max((cap // min_sublane) * min_sublane, min_sublane)
    # Don't use a tile taller than the batch (rounded to the sublane multiple).
    fit_n = max((n_rows // min_sublane) * min_sublane, min_sublane)
    return int(min(cap, fit_n))


def custom_cross_entropy_loss(logits, targets, reduction='mean'):
    """Pallas TPU implementation of CustomCrossEntropyLoss.forward."""
    N, two_c = logits.shape
    C = two_c // 2
    assert two_c == 2 * C and targets.shape == (N, C)

    # bf16/f16 inputs need 16-sublane tiles; f32 needs 8.
    min_sublane = 16 if (logits.dtype.itemsize < 4
                         or targets.dtype.itemsize < 4) else 8
    row_tile = _pick_row_tile(N, C, logits.dtype.itemsize,
                              targets.dtype.itemsize, min_sublane)
    # TODO(synk): for very large C (class dim that does not fit VMEM even at a
    # minimal row tile) add a second, innermost "arbitrary" grid axis over
    # 128-multiple class-column tiles with a per-row accumulator.

    n_rows = N
    if n_rows < row_tile:
        # Keep the block no taller than the array; pad with benign values
        # (a = b = 1, t = 0) and slice the padded rows off below.
        pad = row_tile - n_rows
        logits = jnp.pad(logits, ((0, pad), (0, 0)), constant_values=1.0)
        targets = jnp.pad(targets, ((0, pad), (0, 0)))
        n_rows = row_tile

    grid = (pl.cdiv(n_rows, row_tile),)

    if C % 128 == 0:
        # Read the two halves of `logits` directly as two lane-aligned tiles of
        # the same HBM array: kernel sees a_ref / b_ref, no in-kernel slicing.
        operands = (logits, logits, targets)
        in_specs = [
            pl.BlockSpec((row_tile, C), lambda i: (i, 0)),   # a = logits[:, :C]
            pl.BlockSpec((row_tile, C), lambda i: (i, 1)),   # b = logits[:, C:]
            pl.BlockSpec((row_tile, C), lambda i: (i, 0)),   # targets
        ]
    else:
        # Lane-unaligned halves: split once in XLA so every kernel tile stays
        # (8, 128)-friendly (block last dim == full array dim).
        operands = (logits[:, :C], logits[:, C:], targets)
        in_specs = [
            pl.BlockSpec((row_tile, C), lambda i: (i, 0)),
            pl.BlockSpec((row_tile, C), lambda i: (i, 0)),
            pl.BlockSpec((row_tile, C), lambda i: (i, 0)),
        ]

    out = pl.pallas_call(
        _ce_row_loss_kernel,
        out_shape=jax.ShapeDtypeStruct((n_rows, 1), jnp.float32),
        grid_spec=pltpu.PrefetchScalarGridSpec(
            num_scalar_prefetch=0,
            grid=grid,
            in_specs=in_specs,
            out_specs=pl.BlockSpec((row_tile, 1), lambda i: (i, 0)),
        ),
        compiler_params=pltpu.CompilerParams(
            dimension_semantics=("parallel",),
            vmem_limit_bytes=32 * 1024 * 1024,
        ),
    )(*operands)

    per_row = out[:N, 0]
    if reduction == 'sum':
        return jnp.sum(per_row)
    if reduction == 'mean':
        return jnp.mean(per_row)
    return per_row


def _reference(logits, targets, reduction='mean'):
    C = logits.shape[1] // 2
    a = logits[:, :C]
    b = logits[:, C:]
    p = a / (a + b)
    ce = -(targets * jnp.log(p) + (1 - targets) * jnp.log(1 - p))
    loss = ce.sum(axis=1)
    if reduction == 'sum':
        return loss.sum()
    if reduction == 'mean':
        return loss.mean()
    return loss


if __name__ == "__main__":
    key = jax.random.PRNGKey(0)
    k1, k2, k3, k4 = jax.random.split(key, 4)

    # Primary case: C a multiple of 128 (split-BlockSpec fast path).
    N, C = 16, 128                       # logits: (N, 2*C), targets: (N, C)
    # Positive logits so that p = a/(a+b) lies strictly in (0, 1).
    logits = jax.random.uniform(k1, (N, 2 * C), jnp.float32,
                                minval=0.1, maxval=1.0)
    targets = jax.random.uniform(k2, (N, C), jnp.float32)

    out_mean = jax.block_until_ready(
        custom_cross_entropy_loss(logits, targets, reduction='mean'))
    out_sum = jax.block_until_ready(
        custom_cross_entropy_loss(logits, targets, reduction='sum'))
    out_none = jax.block_until_ready(
        custom_cross_entropy_loss(logits, targets, reduction='none'))

    ref_mean = _reference(logits, targets, 'mean')
    ref_sum = _reference(logits, targets, 'sum')
    ref_none = _reference(logits, targets, 'none')

    assert jnp.allclose(out_mean, ref_mean, rtol=1e-5, atol=1e-4)
    assert jnp.allclose(out_sum, ref_sum, rtol=1e-5, atol=1e-3)
    assert jnp.allclose(out_none, ref_none, rtol=1e-5, atol=1e-4)

    # Ragged batch + lane-unaligned class count (fallback path, partial tiles).
    N2, C2 = 12, 96
    logits2 = jax.random.uniform(k3, (N2, 2 * C2), jnp.float32,
                                 minval=0.1, maxval=1.0)
    targets2 = jax.random.uniform(k4, (N2, C2), jnp.float32)
    out2 = jax.block_until_ready(
        custom_cross_entropy_loss(logits2, targets2, reduction='none'))
    assert jnp.allclose(out2, _reference(logits2, targets2, 'none'),
                        rtol=1e-5, atol=1e-4)

    print("KERNEL_OK")
</pallas_src>

<mosaic_0001>
module attributes {stable_mosaic.version = 11 : i64} {
  func.func @_ce_row_loss_kernel(%arg0: i32, %arg1: memref<16x128xf32, #tpu.memory_space<vmem>>, %arg2: memref<16x128xf32, #tpu.memory_space<vmem>>, %arg3: memref<16x128xf32, #tpu.memory_space<vmem>>, %arg4: memref<16x1xf32, #tpu.memory_space<vmem>>) attributes {dimension_semantics = [#tpu.dimension_semantics<parallel>], iteration_bounds = array<i64: 1>, scalar_prefetch = 0 : i64, scratch_operands = 0 : i64, tpu.core_type = #tpu.core_type<tc>, window_params = [{transform_indices = @transform_0, window_bounds = array<i64: 16, 128>}, {transform_indices = @transform_1, window_bounds = array<i64: 16, 128>}, {transform_indices = @transform_2, window_bounds = array<i64: 16, 128>}, {transform_indices = @transform_3, window_bounds = array<i64: 16, 1>}]} {
    %c0 = arith.constant 0 : index
    %c0_0 = arith.constant 0 : index
    %0 = vector.load %arg1[%c0, %c0_0] : memref<16x128xf32, #tpu.memory_space<vmem>>, vector<16x128xf32>
    %c0_1 = arith.constant 0 : index
    %c0_2 = arith.constant 0 : index
    %1 = vector.load %arg2[%c0_1, %c0_2] : memref<16x128xf32, #tpu.memory_space<vmem>>, vector<16x128xf32>
    %c0_3 = arith.constant 0 : index
    %c0_4 = arith.constant 0 : index
    %2 = vector.load %arg3[%c0_3, %c0_4] : memref<16x128xf32, #tpu.memory_space<vmem>>, vector<16x128xf32>
    %3 = arith.addf %0, %1 : vector<16x128xf32>
    %4 = math.log %3 : vector<16x128xf32>
    %5 = math.log %0 : vector<16x128xf32>
    %6 = arith.mulf %2, %5 : vector<16x128xf32>
    %7 = arith.subf %4, %6 : vector<16x128xf32>
    %cst = arith.constant 1.000000e+00 : f32
    %8 = vector.broadcast %cst : f32 to vector<16x128xf32>
    %9 = arith.subf %8, %2 : vector<16x128xf32>
    %10 = math.log %1 : vector<16x128xf32>
    %11 = arith.mulf %9, %10 : vector<16x128xf32>
    %12 = arith.subf %7, %11 : vector<16x128xf32>
    %cst_5 = arith.constant dense<0.000000e+00> : vector<16xf32>
    %13 = vector.multi_reduction <add>, %12, %cst_5 [1] : vector<16x128xf32> to vector<16xf32>
    %14 = vector.shape_cast %13 : vector<16xf32> to vector<16x1xf32>
    %c0_6 = arith.constant 0 : index
    %c0_7 = arith.constant 0 : index
    %15 = vector.load %arg4[%c0_6, %c0_7] : memref<16x1xf32, #tpu.memory_space<vmem>>, vector<16x1xf32>
    tpu.vector_store %arg4[%c0_6, %c0_7], %14 {strides = array<i32>} : memref<16x1xf32, #tpu.memory_space<vmem>>, vector<16x1xf32>,
    return
  }
  func.func @transform_0(%arg0: i32) -> (i32, i32) {
    %c0_i32 = arith.constant 0 : i32
    %c0_i32_0 = arith.constant 0 : i32
    return %arg0, %c0_i32 : i32, i32
  }
  func.func @transform_1(%arg0: i32) -> (i32, i32) {
    %c1_i32 = arith.constant 1 : i32
    %c0_i32 = arith.constant 0 : i32
    return %arg0, %c1_i32 : i32, i32
  }
  func.func @transform_2(%arg0: i32) -> (i32, i32) {
    %c0_i32 = arith.constant 0 : i32
    %c0_i32_0 = arith.constant 0 : i32
    return %arg0, %c0_i32 : i32, i32
  }
  func.func @transform_3(%arg0: i32) -> (i32, i32) {
    %c0_i32 = arith.constant 0 : i32
    %c0_i32_0 = arith.constant 0 : i32
    return %arg0, %c0_i32 : i32, i32
  }
}

</mosaic_0001>

<llo_original>
// kernel: tpu_custom_call.1
$region0: #{tpu_custom_call.1}
  #allocation0 [shape = 'u32[]', space=smem, size = 0x4, offset = 0x4, fixed_abs, tag = 'smem constant byte address 0x4 - core index']
  #allocation1 [shape = 'u32[72,128]{1,0:T(1,128)}', space=vmem, size = 0x9000, scoped, tag = 'internal scratch']
  %s0 = inlined_call_operand.hbm [shape: f32[16,256], index: 0, kind: input, shape index: {}]
  %s1 = inlined_call_operand.hbm [shape: f32[16,256], index: 1, kind: input, shape index: {}]
  %s2 = inlined_call_operand.hbm [shape: f32[16,128], index: 2, kind: input, shape index: {}]
  %s3 = inlined_call_operand.vmem [shape: f32[16,1], index: 3, kind: output, shape index: {}]
  %s4 = sld [smem:[#allocation0]]
  $region34: #{tpu_custom_call.1} parent=0
    _
  %s6 = ssub.s32 1, %s4
  %s7 = scalar_select 0, %s6, %s4
  $region1: #{tpu_custom_call.1} parent=0
    #allocation2 [shape = 'u8[8192]{0}', space=vmem, size = 0x2000, scoped, tag = 'input window, operand 0, single buffered']
    #allocation3 [shape = 's32[1]{0}', space=sflag, size = 0x4, scoped, tag = 'scoped memory for tpu_custom_call.1']
    #allocation4 [shape = 'u8[8192]{0}', space=vmem, size = 0x2000, scoped, tag = 'input window, operand 1, single buffered']
    #allocation5 [shape = 's32[1]{0}', space=sflag, size = 0x4, scoped, tag = 'scoped memory for tpu_custom_call.1']
    #allocation6 [shape = 'u8[8192]{0}', space=vmem, size = 0x2000, scoped, tag = 'input window, operand 2, single buffered']
    %8 = vsyncpa [#allocation3], 0
    %9 = vsyncpa [#allocation5], 0
    // Predicated region
    $region2: #{tpu_custom_call.1} parent=1 // pred_check
      _
    $region3: #{tpu_custom_call.1} parent=1 // pred_check_branch
      %11 = sbr.rel (0) target = $region5
    $region4: #{tpu_custom_call.1} parent=1 // pred_region
      %13 = vsyncadd [#allocation3], 0
      %s14 = sshll.u32 %s0, 4
      %s15 = int_to_ptr.hbm [resolvable:$true] %s14
      %s16 = sshll.u32 [#allocation2], 4
      %s17 = int_to_ptr.vmem [resolvable:$true] %s16
      %22 = dma.hbm_to_vmem [thread:$0]  %s15, 256, %s17, [#allocation3], 256, 128, 8
    $region5: #{tpu_custom_call.1} parent=1 // pred_fallthru
      _
    // Predicated region
    $region6: #{tpu_custom_call.1} parent=1 // pred_check
      _
    $region7: #{tpu_custom_call.1} parent=1 // pred_check_branch
      %24 = sbr.rel (0) target = $region9
    $region8: #{tpu_custom_call.1} parent=1 // pred_region
      %26 = vsyncadd [#allocation5], 0
      %s27 = scalar_lea.hbm %s1, 8
      %s28 = sshll.u32 %s27, 4
      %s29 = int_to_ptr.hbm [resolvable:$true] %s28
      %s30 = sshll.u32 [#allocation4], 4
      %s31 = int_to_ptr.vmem [resolvable:$true] %s30
      %36 = dma.hbm_to_vmem [thread:$0]  %s29, 256, %s31, [#allocation5], 256, 128, 8
    $region9: #{tpu_custom_call.1} parent=1 // pred_fallthru
      _
    // Predicated region
    $region10: #{tpu_custom_call.1} parent=1 // pred_check
      _
    $region11: #{tpu_custom_call.1} parent=1 // pred_check_branch
      %38 = sbr.rel (0) target = $region13
    $region12: #{tpu_custom_call.1} parent=1 // pred_region
      %40 = vsyncadd [#allocation5], 0
      %s41 = sshll.u32 %s2, 4
      %s42 = int_to_ptr.hbm [resolvable:$true] %s41
      %s43 = sshll.u32 [#allocation6], 4
      %s44 = int_to_ptr.vmem [resolvable:$true] %s43
      %49 = dma.hbm_to_vmem [thread:$0]  %s42, 256, %s44, [#allocation5], 128, 128, 8
    $region13: #{tpu_custom_call.1} parent=1 // pred_fallthru
      _
    // Predicated region
    $region14: #{tpu_custom_call.1} parent=1 // pred_check
      _
    $region15: #{tpu_custom_call.1} parent=1 // pred_check_branch
      %51 = sbr.rel (0) target = $region17
    $region16: #{tpu_custom_call.1} parent=1 // pred_region
      %53 = dma.done [#allocation3], 256
    $region17: #{tpu_custom_call.1} parent=1 // pred_fallthru
      _
    // Predicated region
    $region18: #{tpu_custom_call.1} parent=1 // pred_check
      _
    $region19: #{tpu_custom_call.1} parent=1 // pred_check_branch
      %55 = sbr.rel (0) target = $region21
    $region20: #{tpu_custom_call.1} parent=1 // pred_region
      %57 = dma.done [#allocation5], 256
    $region21: #{tpu_custom_call.1} parent=1 // pred_fallthru
      _
    // Predicated region
    $region22: #{tpu_custom_call.1} parent=1 // pred_check
      _
    $region23: #{tpu_custom_call.1} parent=1 // pred_check_branch
      %59 = sbr.rel (0) target = $region25
    $region24: #{tpu_custom_call.1} parent=1 // pred_region
      %61 = dma.done [#allocation5], 256
    $region25: #{tpu_custom_call.1} parent=1 // pred_fallthru
      _
    %v62 = vld [vmem:[#allocation2] sm:$0xff]
    %v63 = vld [vmem:[#allocation2 + $0x8] sm:$0xff]
    %v64 = vld [vmem:[#allocation4] sm:$0xff]
    %v65 = vld [vmem:[#allocation4 + $0x8] sm:$0xff]
    %v66 = vld [vmem:[#allocation6] sm:$0xff]
    %v67 = vld [vmem:[#allocation6 + $0x8] sm:$0xff]
    %v68 = vadd.f32 %v62, %v64
    %v69 = vadd.f32 %v63, %v65
    %v70 = vlog2.pop %v68
    %v71 = vmul.f32 %v70, 0.6931472
    %v72 = vlog2.pop %v69
    %v73 = vmul.f32 %v72, 0.6931472
    %v74 = vlog2.pop %v62
    %v75 = vmul.f32 %v74, 0.6931472
    %v76 = vlog2.pop %v63
    %v77 = vmul.f32 %v76, 0.6931472
    %v78 = vmul.f32 %v66, %v75
    %v79 = vmul.f32 %v67, %v77
    %v80 = vsub.f32 %v71, %v78
    %v81 = vsub.f32 %v73, %v79
    %v82 = vsub.f32 1.0, %v66
    %v83 = vsub.f32 1.0, %v67
    %v84 = vlog2.pop %v64
    %v85 = vmul.f32 %v84, 0.6931472
    %v86 = vlog2.pop %v65
    %v87 = vmul.f32 %v86, 0.6931472
    %v88 = vmul.f32 %v82, %v85
    %v89 = vmul.f32 %v83, %v87
    %v90 = vsub.f32 %v80, %v88
    %v91 = vsub.f32 %v81, %v89
    %92 = vadd.xlane.f32.xlu0 %v90
    %v93 = vpop.xlane.xlu0 %92
    %94 = vadd.xlane.f32.xlu0 %v91
    %v95 = vpop.xlane.xlu0 %94
    %vm96 = vcmask 7168
    %97 = vst.msk [vmem:[%s3] sm:$0xff] %vm96, %v93
    %98 = vst.msk [vmem:[%s3 + $0x8] sm:$0xff] %vm96, %v95
    // Predicated region
    $region26: #{tpu_custom_call.1} parent=1 // pred_check
      _
    $region27: #{tpu_custom_call.1} parent=1 // pred_check_branch
      %100 = sbr.rel (0) target = $region29
    $region28: #{tpu_custom_call.1} parent=1 // pred_region
      _
    $region29: #{tpu_custom_call.1} parent=1 // pred_fallthru
      _
    // Predicated region
    $region30: #{tpu_custom_call.1} parent=1 // pred_check
      _
    $region31: #{tpu_custom_call.1} parent=1 // pred_check_branch
      %102 = sbr.rel (0) target = $region33
    $region32: #{tpu_custom_call.1} parent=1 // pred_region
      _
    $region33: #{tpu_custom_call.1} parent=1 // pred_fallthru
      _
    %103 = vsyncpa [#allocation3], 1
    %104 = vsyncpa [#allocation5], 1

</llo_original>
